<compile_context>
chip_gen: v7x
topology: tpu7x:2x2x1
jax: 0.10.0
libtpu: 0.0.40
codegen_flags: <defaults>
</compile_context>

<pallas_src>
import functools

import jax
import jax.numpy as jnp
from jax.experimental import pallas as pl
from jax.experimental.pallas import tpu as pltpu


def _vmem_cap_bytes():
    try:
        return int(pltpu.get_tpu_info().vmem_capacity_bytes)
    except Exception:
        return 64 * 1024 * 1024   # conservative fallback (v7x per-core VMEM)


def _bam_kernel(H, W, CRp,
                x_ref, wstk_ref, bsq_ref, b1_ref, w2_ref, b2_ref, w3f_ref,
                o_ref):
    HW = H * W
    f32 = jnp.float32
    x2 = x_ref[0]                                                # (C, HW)

    # ---- fused squeeze matmul on the MXU: [Wsq_pad ; W1_pad] @ x ------------
    s = jnp.dot(wstk_ref[...], x2, preferred_element_type=f32)   # (2*CRp, HW) f32

    # ---- SAM squeeze: 1x1 conv + bias + ReLU (pad rows stay exactly zero) ----
    y_sam = jnp.maximum(s[:CRp, :] + bsq_ref[...], 0.0)          # (CRp, HW)

    # ---- CAM branch (avg-pool commutes with the linear map) -----------------
    cam_pre = jnp.sum(s[CRp:, :], axis=1, keepdims=True) * (1.0 / HW)    # (CRp, 1)
    h1 = jnp.maximum(cam_pre + b1_ref[...], 0.0)                         # (CRp, 1)
    # Tiny MXU dot (replaces the serial CR-step VPU mat-vec); b3 folded into b2.
    z_cam = jnp.dot(w2_ref[...], h1, preferred_element_type=f32) + b2_ref[...]  # (C, 1)

    # ---- SAM excitation: 3x3 conv, dilation=4, "same" padding, 1 channel ----
    # Channel reduction on the MXU: one single-channel map per conv tap,
    # row-grouped by kernel row a into three 8-row blocks (rows 3..7 zero).
    t = jnp.dot(w3f_ref[...], y_sam, preferred_element_type=f32)         # (24, HW)

    lane = jax.lax.broadcasted_iota(jnp.int32, (1, HW), 1)
    col = lane % W
    vmask_top = (lane >= 4 * W).astype(f32)        # output rows y >= 4 may read y-4
    vmask_bot = (lane < HW - 4 * W).astype(f32)    # output rows y < H-4 may read y+4
    hmask_l = (col >= 4).astype(f32)               # output cols x >= 4 may read x-4
    hmask_r = (col < W - 4).astype(f32)            # output cols x < W-4 may read x+4

    up = (4 * W) % HW
    dn = (HW - 4 * W) % HW
    # Vertical +/-4-row shifts (lane rolls by 4*W; whole-vreg moves when W%32==0).
    g = (pltpu.roll(t[0:8, :], up, axis=1) * vmask_top      # taps reading row y-4
         + t[8:16, :]                                       # taps reading row y
         + pltpu.roll(t[16:24, :], dn, axis=1) * vmask_bot)  # taps reading row y+4
    # g rows 0/1/2 = column groups reading x-4 / x / x+4; rows 3..7 are zero.
    z_sam = (g[1:2, :]
             + pltpu.roll(g[0:1, :], 4 % HW, axis=1) * hmask_l
             + pltpu.roll(g[2:3, :], (HW - 4) % HW, axis=1) * hmask_r)    # (1, HW)

    # ---- combine & sigmoid; lane-dense (C, HW) store -------------------------
    o_ref[0] = jax.nn.sigmoid(z_cam + z_sam).astype(o_ref.dtype)


def bam_block_pallas(x_nchw, params, *, matmul_dtype=jnp.float32, out_dtype=None):
    """x_nchw: (B, C, H, W); params in native PyTorch layouts:
       (wsq (CR,C), bsq (CR,), w1 (CR,C), b1 (CR,), w2 (C,CR), b2 (C,),
        w3 (CR,3,3), b3 scalar).  Returns (B, C, H, W) in out_dtype
       (default: x's dtype).  matmul_dtype=bf16 halves HBM read of x."""
    wsq, bsq, w1, b1, w2, b2, w3, b3 = params
    B, C, H, W = x_nchw.shape
    CR = wsq.shape[0]
    HW = H * W
    CRp = ((CR + 7) // 8) * 8          # pad so the Wsq/W1 split is sublane-aligned
    if out_dtype is None:
        out_dtype = x_nchw.dtype
    f32 = jnp.float32

    # Free reshape: NCHW -> (B, C, H*W); cast to the matmul dtype in the
    # wrapper (no per-step in-kernel C*HW cast, half the HBM read for bf16).
    x_flat = x_nchw.reshape(B, C, HW).astype(matmul_dtype)

    # One-off tiny parameter repacking (negligible vs. the feature map).
    wsq_p = jnp.zeros((CRp, C), f32).at[:CR].set(wsq.astype(f32))
    w1_p = jnp.zeros((CRp, C), f32).at[:CR].set(w1.astype(f32))
    wstk = jnp.concatenate([wsq_p, w1_p], axis=0).astype(matmul_dtype)   # (2*CRp, C)

    bsq_c = jnp.zeros((CRp, 1), f32).at[:CR, 0].set(bsq.astype(f32))
    b1_c = jnp.zeros((CRp, 1), f32).at[:CR, 0].set(b1.astype(f32))
    w2_c = jnp.zeros((C, CRp), f32).at[:, :CR].set(w2.astype(f32))       # tiny; keep f32
    b2_c = (b2 + b3).reshape(C, 1).astype(f32)                           # fold conv bias

    # Dilated-conv taps, row-grouped by kernel row a into 8-row blocks (24, CRp).
    tap_groups = []
    for a in range(3):
        grp = jnp.zeros((8, CRp), f32).at[0:3, 0:CR].set(
            jnp.transpose(w3[:, a, :], (1, 0)).astype(f32))              # rows b = 0..2
        tap_groups.append(grp)
    w3f = jnp.concatenate(tap_groups, axis=0)                            # (24, CRp) f32

    kernel = functools.partial(_bam_kernel, H, W, CRp)

    # VMEM budget: double-buffered x/out blocks + all in-kernel temporaries
    # (s, y_sam, t, g, masks, pre-store sigmoid result), capped at ~75% of the
    # queried per-core VMEM (64 MiB on v7x, 128 MiB on v5e/v6e).
    itx = jnp.dtype(matmul_dtype).itemsize
    ito = jnp.dtype(out_dtype).itemsize
    blk = 2 * C * HW * itx + 2 * C * HW * ito
    tmp = (3 * CRp + 24 + 8 + 8) * HW * 4 + C * HW * 4 + (2 << 20)
    cap = int(0.75 * _vmem_cap_bytes())
    vmem_limit = int(min(cap, max(16 << 20, blk + tmp)))

    out_flat = pl.pallas_call(
        kernel,
        out_shape=jax.ShapeDtypeStruct((B, C, HW), out_dtype),
        grid=(B,),
        in_specs=[
            pl.BlockSpec((1, C, HW), lambda b: (b, 0, 0)),     # x (NCHW, flat spatial)
            pl.BlockSpec((2 * CRp, C), lambda b: (0, 0)),      # [Wsq_pad; W1_pad]
            pl.BlockSpec((CRp, 1), lambda b: (0, 0)),          # bsq (padded)
            pl.BlockSpec((CRp, 1), lambda b: (0, 0)),          # b1 (padded)
            pl.BlockSpec((C, CRp), lambda b: (0, 0)),          # W2 (padded cols)
            pl.BlockSpec((C, 1), lambda b: (0, 0)),            # b2 + b3
            pl.BlockSpec((24, CRp), lambda b: (0, 0)),         # dilated-conv taps
        ],
        out_specs=pl.BlockSpec((1, C, HW), lambda b: (b, 0, 0)),
        compiler_params=pltpu.CompilerParams(
            dimension_semantics=("parallel",),
            vmem_limit_bytes=vmem_limit),
    )(x_flat, wstk, bsq_c, b1_c, w2_c, b2_c, w3f)

    # Free reshape back to NCHW.
    return out_flat.reshape(B, C, H, W)


def bam_reference(x, params):
    """Pure-JAX reference (NCHW), same math as the kernel (padding=4 variant)."""
    wsq, bsq, w1, b1, w2, b2, w3, b3 = params
    y_cam = jnp.mean(x, axis=(2, 3))                           # (B, C)
    h1 = jax.nn.relu(y_cam @ w1.T + b1)                        # (B, CR)
    z_cam = h1 @ w2.T + b2                                     # (B, C)
    y_sam = jnp.einsum('bchw,rc->brhw', x, wsq) + bsq.reshape(1, -1, 1, 1)
    y_sam = jax.nn.relu(y_sam)
    z_sam = jax.lax.conv_general_dilated(
        y_sam, w3[None], window_strides=(1, 1),
        padding=((4, 4), (4, 4)), rhs_dilation=(4, 4),
        dimension_numbers=('NCHW', 'OIHW', 'NCHW')) + b3
    return jax.nn.sigmoid(z_cam[:, :, None, None] + z_sam)


if __name__ == "__main__":
    B, C, H, W = 2, 8, 16, 16
    ratio = 2
    CR = C // ratio

    key = jax.random.PRNGKey(0)
    ks = jax.random.split(key, 9)
    x = jax.random.normal(ks[0], (B, C, H, W), jnp.float32)

    # Deterministic synthetic parameters in native PyTorch layouts.
    wsq = jax.random.normal(ks[1], (CR, C), jnp.float32) * 0.3    # Conv2d 1x1 weight
    bsq = jax.random.normal(ks[2], (CR,), jnp.float32) * 0.1
    w1 = jax.random.normal(ks[3], (CR, C), jnp.float32) * 0.3     # Linear(C->CR) weight
    b1 = jax.random.normal(ks[4], (CR,), jnp.float32) * 0.1
    w2 = jax.random.normal(ks[5], (C, CR), jnp.float32) * 0.3     # Linear(CR->C) weight
    b2 = jax.random.normal(ks[6], (C,), jnp.float32) * 0.1
    w3 = jax.random.normal(ks[7], (CR, 3, 3), jnp.float32) * 0.3  # dilated conv weight
    b3 = jax.random.normal(ks[8], (), jnp.float32) * 0.1
    params = (wsq, bsq, w1, b1, w2, b2, w3, b3)

    ref = bam_reference(x, params)

    # f32 path (exact-ish): tight tolerance.
    out = jax.block_until_ready(bam_block_pallas(x, params))
    assert out.shape == x.shape, (out.shape, x.shape)
    err = float(jnp.max(jnp.abs(out - ref)))
    assert err < 1e-4, f"f32 max abs err {err}"

    # bf16 HBM/matmul path with bf16 output (v6e/v7x MXU, half the HBM traffic);
    # accumulation and all element-wise math stay f32 (v5e-friendly).
    out_bf16 = jax.block_until_ready(
        bam_block_pallas(x, params, matmul_dtype=jnp.bfloat16,
                         out_dtype=jnp.bfloat16))
    assert out_bf16.shape == x.shape, (out_bf16.shape, x.shape)
    err_bf16 = float(jnp.max(jnp.abs(out_bf16.astype(jnp.float32) - ref)))
    assert err_bf16 < 5e-2, f"bf16 max abs err {err_bf16}"

    print("KERNEL_OK")
</pallas_src>

<mosaic_0001>
module attributes {stable_mosaic.version = 11 : i64} {
  func.func @_bam_kernel(%arg0: i32, %arg1: memref<1x8x256xf32, #tpu.memory_space<vmem>>, %arg2: memref<16x8xf32, #tpu.memory_space<vmem>>, %arg3: memref<8x1xf32, #tpu.memory_space<vmem>>, %arg4: memref<8x1xf32, #tpu.memory_space<vmem>>, %arg5: memref<8x8xf32, #tpu.memory_space<vmem>>, %arg6: memref<8x1xf32, #tpu.memory_space<vmem>>, %arg7: memref<24x8xf32, #tpu.memory_space<vmem>>, %arg8: memref<1x8x256xf32, #tpu.memory_space<vmem>>) attributes {dimension_semantics = [#tpu.dimension_semantics<parallel>], iteration_bounds = array<i64: 2>, scalar_prefetch = 0 : i64, scratch_operands = 0 : i64, tpu.core_type = #tpu.core_type<tc>, window_params = [{transform_indices = @transform_0, window_bounds = array<i64: 1, 8, 256>}, {pipeline_mode = #tpu.pipeline_mode<synchronous>, transform_indices = @transform_1, window_bounds = array<i64: 16, 8>}, {pipeline_mode = #tpu.pipeline_mode<synchronous>, transform_indices = @transform_2, window_bounds = array<i64: 8, 1>}, {pipeline_mode = #tpu.pipeline_mode<synchronous>, transform_indices = @transform_3, window_bounds = array<i64: 8, 1>}, {pipeline_mode = #tpu.pipeline_mode<synchronous>, transform_indices = @transform_4, window_bounds = array<i64: 8, 8>}, {pipeline_mode = #tpu.pipeline_mode<synchronous>, transform_indices = @transform_5, window_bounds = array<i64: 8, 1>}, {pipeline_mode = #tpu.pipeline_mode<synchronous>, transform_indices = @transform_6, window_bounds = array<i64: 24, 8>}, {transform_indices = @transform_7, window_bounds = array<i64: 1, 8, 256>}]} {
    %c0 = arith.constant 0 : index
    %c0_0 = arith.constant 0 : index
    %c0_1 = arith.constant 0 : index
    %0 = vector.load %arg1[%c0, %c0_0, %c0_1] : memref<1x8x256xf32, #tpu.memory_space<vmem>>, vector<1x8x256xf32>
    %1 = vector.shape_cast %0 : vector<1x8x256xf32> to vector<8x256xf32>
    %c0_2 = arith.constant 0 : index
    %c0_3 = arith.constant 0 : index
    %2 = vector.load %arg2[%c0_2, %c0_3] : memref<16x8xf32, #tpu.memory_space<vmem>>, vector<16x8xf32>
    %cst = arith.constant dense<0.000000e+00> : vector<16x256xf32>
    %3 = tpu.matmul %2, %1, %cst {dimension_numbers = #tpu.dot_dimension_numbers<[1], [0], [0], [1], [0, 0, 1, 1], [], []>} : vector<16x8xf32>, vector<8x256xf32>, vector<16x256xf32> -> vector<16x256xf32>
    %4 = vector.extract_strided_slice %3 {offsets = [0, 0], sizes = [8, 256], strides = [1, 1]} : vector<16x256xf32> to vector<8x256xf32>
    %c0_4 = arith.constant 0 : index
    %c0_5 = arith.constant 0 : index
    %5 = vector.load %arg3[%c0_4, %c0_5] : memref<8x1xf32, #tpu.memory_space<vmem>>, vector<8x1xf32>
    %6 = vector.broadcast %5 : vector<8x1xf32> to vector<8x256xf32>
    %7 = arith.addf %4, %6 : vector<8x256xf32>
    %cst_6 = arith.constant 0.000000e+00 : f32
    %8 = vector.broadcast %cst_6 : f32 to vector<8x256xf32>
    %9 = arith.maximumf %7, %8 : vector<8x256xf32>
    %10 = vector.extract_strided_slice %3 {offsets = [8, 0], sizes = [8, 256], strides = [1, 1]} : vector<16x256xf32> to vector<8x256xf32>
    %cst_7 = arith.constant dense<0.000000e+00> : vector<8xf32>
    %11 = vector.multi_reduction <add>, %10, %cst_7 [1] : vector<8x256xf32> to vector<8xf32>
    %12 = vector.shape_cast %11 : vector<8xf32> to vector<8x1xf32>
    %cst_8 = arith.constant 3.906250e-03 : f32
    %13 = vector.broadcast %cst_8 : f32 to vector<8x1xf32>
    %14 = arith.mulf %12, %13 : vector<8x1xf32>
    %c0_9 = arith.constant 0 : index
    %c0_10 = arith.constant 0 : index
    %15 = vector.load %arg4[%c0_9, %c0_10] : memref<8x1xf32, #tpu.memory_space<vmem>>, vector<8x1xf32>
    %16 = arith.addf %14, %15 : vector<8x1xf32>
    %cst_11 = arith.constant 0.000000e+00 : f32
    %17 = vector.broadcast %cst_11 : f32 to vector<8x1xf32>
    %18 = arith.maximumf %16, %17 : vector<8x1xf32>
    %c0_12 = arith.constant 0 : index
    %c0_13 = arith.constant 0 : index
    %19 = vector.load %arg5[%c0_12, %c0_13] : memref<8x8xf32, #tpu.memory_space<vmem>>, vector<8x8xf32>
    %cst_14 = arith.constant dense<0.000000e+00> : vector<8x1xf32>
    %20 = tpu.matmul %19, %18, %cst_14 {dimension_numbers = #tpu.dot_dimension_numbers<[1], [0], [0], [1], [0, 0, 1, 1], [], []>} : vector<8x8xf32>, vector<8x1xf32>, vector<8x1xf32> -> vector<8x1xf32>
    %c0_15 = arith.constant 0 : index
    %c0_16 = arith.constant 0 : index
    %21 = vector.load %arg6[%c0_15, %c0_16] : memref<8x1xf32, #tpu.memory_space<vmem>>, vector<8x1xf32>
    %22 = arith.addf %20, %21 : vector<8x1xf32>
    %c0_17 = arith.constant 0 : index
    %c0_18 = arith.constant 0 : index
    %23 = vector.load %arg7[%c0_17, %c0_18] : memref<24x8xf32, #tpu.memory_space<vmem>>, vector<24x8xf32>
    %cst_19 = arith.constant dense<0.000000e+00> : vector<24x256xf32>
    %24 = tpu.matmul %23, %9, %cst_19 {dimension_numbers = #tpu.dot_dimension_numbers<[1], [0], [0], [1], [0, 0, 1, 1], [], []>} : vector<24x8xf32>, vector<8x256xf32>, vector<24x256xf32> -> vector<24x256xf32>
    %25 = tpu.iota {dimensions = array<i32: 1>} : vector<1x256xi32>
    %c16_i32 = arith.constant 16 : i32
    %c0_i32 = arith.constant 0 : i32
    %26 = arith.cmpi eq, %c16_i32, %c0_i32 : i32
    %c1_i32 = arith.constant 1 : i32
    %27 = arith.select %26, %c1_i32, %c16_i32 : i32
    %28 = vector.broadcast %27 : i32 to vector<1x256xi32>
    %29 = arith.remsi %25, %28 : vector<1x256xi32>
    %c0_i32_20 = arith.constant 0 : i32
    %30 = vector.broadcast %c0_i32_20 : i32 to vector<1x256xi32>
    %31 = arith.cmpi ne, %29, %30 : vector<1x256xi32>
    %c0_i32_21 = arith.constant 0 : i32
    %32 = vector.broadcast %c0_i32_21 : i32 to vector<1x256xi32>
    %33 = arith.cmpi slt, %29, %32 : vector<1x256xi32>
    %c0_i32_22 = arith.constant 0 : i32
    %34 = arith.cmpi slt, %27, %c0_i32_22 : i32
    %35 = vector.broadcast %34 : i1 to vector<1x256xi1>
    %36 = vector.broadcast %35 : vector<1x256xi1> to vector<1x256xi1>
    %37 = arith.xori %33, %36 : vector<1x256xi1>
    %38 = arith.andi %37, %31 : vector<1x256xi1>
    %39 = vector.broadcast %27 : i32 to vector<1x256xi32>
    %40 = arith.addi %29, %39 : vector<1x256xi32>
    %41 = arith.select %38, %40, %29 : vector<1x256xi1>, vector<1x256xi32>
    %c64_i32 = arith.constant 64 : i32
    %42 = vector.broadcast %c64_i32 : i32 to vector<1x256xi32>
    %43 = arith.cmpi sge, %25, %42 : vector<1x256xi32>
    %44 = arith.extui %43 : vector<1x256xi1> to vector<1x256xi32>
    %45 = arith.sitofp %44 : vector<1x256xi32> to vector<1x256xf32>
    %c192_i32 = arith.constant 192 : i32
    %46 = vector.broadcast %c192_i32 : i32 to vector<1x256xi32>
    %47 = arith.cmpi slt, %25, %46 : vector<1x256xi32>
    %48 = arith.extui %47 : vector<1x256xi1> to vector<1x256xi32>
    %49 = arith.sitofp %48 : vector<1x256xi32> to vector<1x256xf32>
    %c4_i32 = arith.constant 4 : i32
    %50 = vector.broadcast %c4_i32 : i32 to vector<1x256xi32>
    %51 = arith.cmpi sge, %41, %50 : vector<1x256xi32>
    %52 = arith.extui %51 : vector<1x256xi1> to vector<1x256xi32>
    %53 = arith.sitofp %52 : vector<1x256xi32> to vector<1x256xf32>
    %c12_i32 = arith.constant 12 : i32
    %54 = vector.broadcast %c12_i32 : i32 to vector<1x256xi32>
    %55 = arith.cmpi slt, %41, %54 : vector<1x256xi32>
    %56 = arith.extui %55 : vector<1x256xi1> to vector<1x256xi32>
    %57 = arith.sitofp %56 : vector<1x256xi32> to vector<1x256xf32>
    %58 = vector.extract_strided_slice %24 {offsets = [0, 0], sizes = [8, 256], strides = [1, 1]} : vector<24x256xf32> to vector<8x256xf32>
    %c64_i32_23 = arith.constant 64 : i32
    %59 = tpu.dynamic_rotate %58 by %c64_i32_23 dim 1 : vector<8x256xf32>, i32 -> vector<8x256xf32>
    %60 = vector.broadcast %45 : vector<1x256xf32> to vector<8x256xf32>
    %61 = arith.mulf %59, %60 : vector<8x256xf32>
    %62 = vector.extract_strided_slice %24 {offsets = [8, 0], sizes = [8, 256], strides = [1, 1]} : vector<24x256xf32> to vector<8x256xf32>
    %63 = arith.addf %61, %62 : vector<8x256xf32>
    %64 = vector.extract_strided_slice %24 {offsets = [16, 0], sizes = [8, 256], strides = [1, 1]} : vector<24x256xf32> to vector<8x256xf32>
    %c192_i32_24 = arith.constant 192 : i32
    %65 = tpu.dynamic_rotate %64 by %c192_i32_24 dim 1 : vector<8x256xf32>, i32 -> vector<8x256xf32>
    %66 = vector.broadcast %49 : vector<1x256xf32> to vector<8x256xf32>
    %67 = arith.mulf %65, %66 : vector<8x256xf32>
    %68 = arith.addf %63, %67 : vector<8x256xf32>
    %69 = vector.extract_strided_slice %68 {offsets = [1, 0], sizes = [1, 256], strides = [1, 1]} : vector<8x256xf32> to vector<1x256xf32>
    %70 = vector.extract_strided_slice %68 {offsets = [0, 0], sizes = [1, 256], strides = [1, 1]} : vector<8x256xf32> to vector<1x256xf32>
    %c4_i32_25 = arith.constant 4 : i32
    %71 = tpu.dynamic_rotate %70 by %c4_i32_25 dim 1 : vector<1x256xf32>, i32 -> vector<1x256xf32>
    %72 = arith.mulf %71, %53 : vector<1x256xf32>
    %73 = arith.addf %69, %72 : vector<1x256xf32>
    %74 = vector.extract_strided_slice %68 {offsets = [2, 0], sizes = [1, 256], strides = [1, 1]} : vector<8x256xf32> to vector<1x256xf32>
    %c252_i32 = arith.constant 252 : i32
    %75 = tpu.dynamic_rotate %74 by %c252_i32 dim 1 : vector<1x256xf32>, i32 -> vector<1x256xf32>
    %76 = arith.mulf %75, %57 : vector<1x256xf32>
    %77 = arith.addf %73, %76 : vector<1x256xf32>
    %78 = vector.broadcast %22 : vector<8x1xf32> to vector<8x256xf32>
    %79 = vector.broadcast %77 : vector<1x256xf32> to vector<8x256xf32>
    %80 = arith.addf %78, %79 : vector<8x256xf32>
    %81 = arith.negf %80 : vector<8x256xf32>
    %82 = math.exp %81 : vector<8x256xf32>
    %cst_26 = arith.constant 1.000000e+00 : f32
    %83 = vector.broadcast %cst_26 : f32 to vector<8x256xf32>
    %84 = arith.addf %83, %82 : vector<8x256xf32>
    %85 = arith.divf %83, %84 : vector<8x256xf32>
    %c0_27 = arith.constant 0 : index
    %c0_28 = arith.constant 0 : index
    %c0_29 = arith.constant 0 : index
    %86 = vector.load %arg8[%c0_27, %c0_28, %c0_29] : memref<1x8x256xf32, #tpu.memory_space<vmem>>, vector<1x8x256xf32>
    %87 = vector.shape_cast %86 : vector<1x8x256xf32> to vector<8x256xf32>
    %88 = vector.shape_cast %85 : vector<8x256xf32> to vector<1x8x256xf32>
    tpu.vector_store %arg8[%c0_27, %c0_28, %c0_29], %88 {strides = array<i32>} : memref<1x8x256xf32, #tpu.memory_space<vmem>>, vector<1x8x256xf32>,
    return
  }
  func.func @transform_0(%arg0: i32) -> (i32, i32, i32) {
    %c0_i32 = arith.constant 0 : i32
    %c0_i32_0 = arith.constant 0 : i32
    %c0_i32_1 = arith.constant 0 : i32
    return %arg0, %c0_i32, %c0_i32_0 : i32, i32, i32
  }
  func.func @transform_1(%arg0: i32) -> (i32, i32) {
    %c0_i32 = arith.constant 0 : i32
    %c0_i32_0 = arith.constant 0 : i32
    %c0_i32_1 = arith.constant 0 : i32
    return %c0_i32, %c0_i32_0 : i32, i32
  }
  func.func @transform_2(%arg0: i32) -> (i32, i32) {
    %c0_i32 = arith.constant 0 : i32
    %c0_i32_0 = arith.constant 0 : i32
    %c0_i32_1 = arith.constant 0 : i32
    return %c0_i32, %c0_i32_0 : i32, i32
  }
  func.func @transform_3(%arg0: i32) -> (i32, i32) {
    %c0_i32 = arith.constant 0 : i32
    %c0_i32_0 = arith.constant 0 : i32
    %c0_i32_1 = arith.constant 0 : i32
    return %c0_i32, %c0_i32_0 : i32, i32
  }
  func.func @transform_4(%arg0: i32) -> (i32, i32) {
    %c0_i32 = arith.constant 0 : i32
    %c0_i32_0 = arith.constant 0 : i32
    %c0_i32_1 = arith.constant 0 : i32
    return %c0_i32, %c0_i32_0 : i32, i32
  }
  func.func @transform_5(%arg0: i32) -> (i32, i32) {
    %c0_i32 = arith.constant 0 : i32
    %c0_i32_0 = arith.constant 0 : i32
    %c0_i32_1 = arith.constant 0 : i32
    return %c0_i32, %c0_i32_0 : i32, i32
  }
  func.func @transform_6(%arg0: i32) -> (i32, i32) {
    %c0_i32 = arith.constant 0 : i32
    %c0_i32_0 = arith.constant 0 : i32
    %c0_i32_1 = arith.constant 0 : i32
    return %c0_i32, %c0_i32_0 : i32, i32
  }
  func.func @transform_7(%arg0: i32) -> (i32, i32, i32) {
    %c0_i32 = arith.constant 0 : i32
    %c0_i32_0 = arith.constant 0 : i32
    %c0_i32_1 = arith.constant 0 : i32
    return %arg0, %c0_i32, %c0_i32_0 : i32, i32, i32
  }
}

</mosaic_0001>

<llo_original>
// kernel: tpu_custom_call.1
$region0: #{tpu_custom_call.1}
  #allocation0 [shape = 'u32[]', space=smem, size = 0x4, offset = 0x4, fixed_abs, tag = 'smem constant byte address 0x4 - core index']
  #allocation1 [shape = 'u32[144,128]{1,0:T(1,128)}', space=vmem, size = 0x12000, scoped, tag = 'internal scratch']
  %s0 = inlined_call_operand.vmem [shape: f32[2,8,256], index: 0, kind: input, shape index: {}]
  %s1 = inlined_call_operand.vmem [shape: f32[16,8], index: 1, kind: input, shape index: {}]
  %s2 = inlined_call_operand.vmem [shape: f32[8,1], index: 2, kind: input, shape index: {}]
  %s3 = inlined_call_operand.vmem [shape: f32[8,1], index: 3, kind: input, shape index: {}]
  %s4 = inlined_call_operand.vmem [shape: f32[8,8], index: 4, kind: input, shape index: {}]
  %s5 = inlined_call_operand.vmem [shape: f32[8,1], index: 5, kind: input, shape index: {}]
  %s6 = inlined_call_operand.vmem [shape: f32[24,8], index: 6, kind: input, shape index: {}]
  %s7 = inlined_call_operand.hbm [shape: f32[2,8,256], index: 7, kind: output, shape index: {}]
  %s8 = sld [smem:[#allocation0]]
  $region61: #{tpu_custom_call.1} parent=0
    _
  %s10 = ssub.s32 1, %s8
  %s11 = scalar_select 0, %s10, %s8
  $region1: #{tpu_custom_call.1} parent=0
    #allocation2 [shape = 'u8[16384]{0}', space=vmem, size = 0x4000, scoped, tag = 'output window, operand 0']
    #allocation3 [shape = 's32[2]{0}', space=sflag, size = 0x8, scoped, tag = 'scoped memory for tpu_custom_call.1']
    %12 = vsyncpa [#allocation3], 0
    %s13 = scalar_lea.sflag [#allocation3], 1
    %14 = vsyncpa %s13, 0
    loop: start=0, step=1, limit=4
    $region2: #{tpu_custom_call.1} parent=1 // loop_pre_header
      _
    $region3: #{tpu_custom_call.1} parent=1 // loop_header
      %s16 = sphi 0, %s20
      %p17 = scmp.ge.s32.totalorder %s16, 4
      %s26 = sphi 0, %s28
      %s29 = sphi 0, %s26
      %s30 = sphi 0, %s29
      %s46 = sphi 0, %s30
      %s50 = sphi 0, %s50
      %s52 = sphi 0, %s50
      %s53 = sphi 0, %s52
      %s67 = sphi 0, %s53
      %s71 = sphi 0, %s71
      %s73 = sphi 0, %s71
      %s74 = sphi 0, %s73
      %s88 = sphi 0, %s74
      %s92 = sphi 0, %s92
      %s94 = sphi 0, %s92
      %s95 = sphi 0, %s94
      %s109 = sphi 0, %s95
      %s113 = sphi 0, %s113
      %s115 = sphi 0, %s113
      %s116 = sphi 0, %s115
      %s130 = sphi 0, %s116
      %s134 = sphi 0, %s134
      %s136 = sphi 0, %s134
      %s137 = sphi 0, %s136
      %s151 = sphi 0, %s137
      %s155 = sphi 0, %s155
      %s157 = sphi 0, %s155
      %s158 = sphi 0, %s157
      %s172 = sphi 0, %s158
      %s178 = sphi 0, %s180
      %s181 = sphi 0, %s178
      %s182 = sphi 0, %s181
      %s198 = sphi 0, %s182
    $region4: #{tpu_custom_call.1} parent=1 // loop_header_branch
      %19 = sbr.rel (%p17) target = $region8
    $region5: #{tpu_custom_call.1} parent=1 // loop_body
      %s21 = ssub.s32 %s16, 1
      %s22 = ssub.s32 %s16, 2
      %s23 = sadd.s32 %s16, 1
      %s24 = ssub.s32 %s16, %s23
      %p25 = scmp.eq.s32.totalorder %s24, 0
      %s27 = sadd.s32 %s26, 1
      %s28 = scalar_select %p25, %s26, %s27
      %p31 = pneg %p25
      %p32 = scmp.eq.s32.totalorder %s16, 1
      %p33 = por %p31, %p32
      %p34 = scmp.ne.s32.totalorder %s26, %s29
      %p35 = scmp.eq.s32.totalorder %s16, 0
      %p36 = por %p34, %p35
      %p37 = scmp.ne.s32.totalorder %s26, %s29
      %p38 = scmp.eq.s32.totalorder %s21, 1
      %p39 = por %p37, %p38
      %p40 = scmp.ne.s32.totalorder %s29, %s30
      %p41 = scmp.eq.s32.totalorder %s21, 0
      %p42 = por %p40, %p41
      %p43 = scmp.ne.s32.totalorder %s29, %s30
      %p44 = scmp.eq.s32.totalorder %s22, 1
      %p45 = por %p43, %p44
      %p47 = scmp.ne.s32.totalorder %s30, %s46
      %p48 = scmp.eq.s32.totalorder %s22, 0
      %p49 = por %p47, %p48
      %s51 = sadd.s32 %s50, 1
      %p54 = scmp.eq.s32.totalorder %s16, 1
      %p55 = scmp.ne.s32.totalorder %s50, %s52
      %p56 = scmp.eq.s32.totalorder %s16, 0
      %p57 = por %p55, %p56
      %p58 = scmp.ne.s32.totalorder %s50, %s52
      %p59 = scmp.eq.s32.totalorder %s21, 1
      %p60 = por %p58, %p59
      %p61 = scmp.ne.s32.totalorder %s52, %s53
      %p62 = scmp.eq.s32.totalorder %s21, 0
      %p63 = por %p61, %p62
      %p64 = scmp.ne.s32.totalorder %s52, %s53
      %p65 = scmp.eq.s32.totalorder %s22, 1
      %p66 = por %p64, %p65
      %p68 = scmp.ne.s32.totalorder %s53, %s67
      %p69 = scmp.eq.s32.totalorder %s22, 0
      %p70 = por %p68, %p69
      %s72 = sadd.s32 %s71, 1
      %p75 = scmp.eq.s32.totalorder %s16, 1
      %p76 = scmp.ne.s32.totalorder %s71, %s73
      %p77 = scmp.eq.s32.totalorder %s16, 0
      %p78 = por %p76, %p77
      %p79 = scmp.ne.s32.totalorder %s71, %s73
      %p80 = scmp.eq.s32.totalorder %s21, 1
      %p81 = por %p79, %p80
      %p82 = scmp.ne.s32.totalorder %s73, %s74
      %p83 = scmp.eq.s32.totalorder %s21, 0
      %p84 = por %p82, %p83
      %p85 = scmp.ne.s32.totalorder %s73, %s74
      %p86 = scmp.eq.s32.totalorder %s22, 1
      %p87 = por %p85, %p86
      %p89 = scmp.ne.s32.totalorder %s74, %s88
      %p90 = scmp.eq.s32.totalorder %s22, 0
      %p91 = por %p89, %p90
      %s93 = sadd.s32 %s92, 1
      %p96 = scmp.eq.s32.totalorder %s16, 1
      %p97 = scmp.ne.s32.totalorder %s92, %s94
      %p98 = scmp.eq.s32.totalorder %s16, 0
      %p99 = por %p97, %p98
      %p100 = scmp.ne.s32.totalorder %s92, %s94
      %p101 = scmp.eq.s32.totalorder %s21, 1
      %p102 = por %p100, %p101
      %p103 = scmp.ne.s32.totalorder %s94, %s95
      %p104 = scmp.eq.s32.totalorder %s21, 0
      %p105 = por %p103, %p104
      %p106 = scmp.ne.s32.totalorder %s94, %s95
      %p107 = scmp.eq.s32.totalorder %s22, 1
      %p108 = por %p106, %p107
      %p110 = scmp.ne.s32.totalorder %s95, %s109
      %p111 = scmp.eq.s32.totalorder %s22, 0
      %p112 = por %p110, %p111
      %s114 = sadd.s32 %s113, 1
      %p117 = scmp.eq.s32.totalorder %s16, 1
      %p118 = scmp.ne.s32.totalorder %s113, %s115
      %p119 = scmp.eq.s32.totalorder %s16, 0
      %p120 = por %p118, %p119
      %p121 = scmp.ne.s32.totalorder %s113, %s115
      %p122 = scmp.eq.s32.totalorder %s21, 1
      %p123 = por %p121, %p122
      %p124 = scmp.ne.s32.totalorder %s115, %s116
      %p125 = scmp.eq.s32.totalorder %s21, 0
      %p126 = por %p124, %p125
      %p127 = scmp.ne.s32.totalorder %s115, %s116
      %p128 = scmp.eq.s32.totalorder %s22, 1
      %p129 = por %p127, %p128
      %p131 = scmp.ne.s32.totalorder %s116, %s130
      %p132 = scmp.eq.s32.totalorder %s22, 0
      %p133 = por %p131, %p132
      %s135 = sadd.s32 %s134, 1
      %p138 = scmp.eq.s32.totalorder %s16, 1
      %p139 = scmp.ne.s32.totalorder %s134, %s136
      %p140 = scmp.eq.s32.totalorder %s16, 0
      %p141 = por %p139, %p140
      %p142 = scmp.ne.s32.totalorder %s134, %s136
      %p143 = scmp.eq.s32.totalorder %s21, 1
      %p144 = por %p142, %p143
      %p145 = scmp.ne.s32.totalorder %s136, %s137
      %p146 = scmp.eq.s32.totalorder %s21, 0
      %p147 = por %p145, %p146
      %p148 = scmp.ne.s32.totalorder %s136, %s137
      %p149 = scmp.eq.s32.totalorder %s22, 1
      %p150 = por %p148, %p149
      %p152 = scmp.ne.s32.totalorder %s137, %s151
      %p153 = scmp.eq.s32.totalorder %s22, 0
      %p154 = por %p152, %p153
      %s156 = sadd.s32 %s155, 1
      %p159 = scmp.eq.s32.totalorder %s16, 1
      %p160 = scmp.ne.s32.totalorder %s155, %s157
      %p161 = scmp.eq.s32.totalorder %s16, 0
      %p162 = por %p160, %p161
      %p163 = scmp.ne.s32.totalorder %s155, %s157
      %p164 = scmp.eq.s32.totalorder %s21, 1
      %p165 = por %p163, %p164
      %p166 = scmp.ne.s32.totalorder %s157, %s158
      %p167 = scmp.eq.s32.totalorder %s21, 0
      %p168 = por %p166, %p167
      %p169 = scmp.ne.s32.totalorder %s157, %s158
      %p170 = scmp.eq.s32.totalorder %s22, 1
      %p171 = por %p169, %p170
      %p173 = scmp.ne.s32.totalorder %s158, %s172
      %p174 = scmp.eq.s32.totalorder %s22, 0
      %p175 = por %p173, %p174
      %s176 = ssub.s32 %s16, %s23
      %p177 = scmp.eq.s32.totalorder %s176, 0
      %s179 = sadd.s32 %s178, 1
      %s180 = scalar_select %p177, %s178, %s179
      %p183 = pneg %p177
      %p184 = scmp.eq.s32.totalorder %s16, 1
      %p185 = por %p183, %p184
      %p186 = scmp.ne.s32.totalorder %s178, %s181
      %p187 = scmp.eq.s32.totalorder %s16, 0
      %p188 = por %p186, %p187
      %p189 = scmp.ne.s32.totalorder %s178, %s181
      %p190 = scmp.eq.s32.totalorder %s21, 1
      %p191 = por %p189, %p190
      %p192 = scmp.ne.s32.totalorder %s181, %s182
      %p193 = scmp.eq.s32.totalorder %s21, 0
      %p194 = por %p192, %p193
      %p195 = scmp.ne.s32.totalorder %s181, %s182
      %p196 = scmp.eq.s32.totalorder %s22, 1
      %p197 = por %p195, %p196
      %p199 = scmp.ne.s32.totalorder %s182, %s198
      %p200 = scmp.eq.s32.totalorder %s22, 0
      %p201 = por %p199, %p200
      %p202 = scmp.le.s32.totalorder 1, %s16
      %p203 = scmp.lt.s32.totalorder %s16, 3
      %p204 = pnand %p202, %p203
      %p205 = pneg %p204
      // Predicated region
      $region9: #{tpu_custom_call.1} parent=5 // pred_check
        _
      $region10: #{tpu_custom_call.1} parent=5 // pred_check_branch
        %207 = sbr.rel (%p204) target = $region12
      $region11: #{tpu_custom_call.1} parent=5 // pred_region
        %s208 = ssub.s32 %s16, 1
        // Predicated region
        $region13: #{tpu_custom_call.1} parent=11 // pred_check
          %p209 = pneg %p63
        $region14: #{tpu_custom_call.1} parent=11 // pred_check_branch
          %211 = sbr.rel (%p209) target = $region16
        $region15: #{tpu_custom_call.1} parent=11 // pred_region
          _
        $region16: #{tpu_custom_call.1} parent=11 // pred_fallthru
          _
        // Predicated region
        $region17: #{tpu_custom_call.1} parent=11 // pred_check
          %p212 = pneg %p84
        $region18: #{tpu_custom_call.1} parent=11 // pred_check_branch
          %214 = sbr.rel (%p212) target = $region20
        $region19: #{tpu_custom_call.1} parent=11 // pred_region
          _
        $region20: #{tpu_custom_call.1} parent=11 // pred_fallthru
          _
        // Predicated region
        $region21: #{tpu_custom_call.1} parent=11 // pred_check
          %p215 = pneg %p105
        $region22: #{tpu_custom_call.1} parent=11 // pred_check_branch
          %217 = sbr.rel (%p215) target = $region24
        $region23: #{tpu_custom_call.1} parent=11 // pred_region
          _
        $region24: #{tpu_custom_call.1} parent=11 // pred_fallthru
          _
        // Predicated region
        $region25: #{tpu_custom_call.1} parent=11 // pred_check
          %p218 = pneg %p126
        $region26: #{tpu_custom_call.1} parent=11 // pred_check_branch
          %220 = sbr.rel (%p218) target = $region28
        $region27: #{tpu_custom_call.1} parent=11 // pred_region
          _
        $region28: #{tpu_custom_call.1} parent=11 // pred_fallthru
          _
        // Predicated region
        $region29: #{tpu_custom_call.1} parent=11 // pred_check
          %p221 = pneg %p147
        $region30: #{tpu_custom_call.1} parent=11 // pred_check_branch
          %223 = sbr.rel (%p221) target = $region32
        $region31: #{tpu_custom_call.1} parent=11 // pred_region
          _
        $region32: #{tpu_custom_call.1} parent=11 // pred_fallthru
          _
        // Predicated region
        $region33: #{tpu_custom_call.1} parent=11 // pred_check
          %p224 = pneg %p168
        $region34: #{tpu_custom_call.1} parent=11 // pred_check_branch
          %226 = sbr.rel (%p224) target = $region36
        $region35: #{tpu_custom_call.1} parent=11 // pred_region
          _
        $region36: #{tpu_custom_call.1} parent=11 // pred_fallthru
          _
      $region12: #{tpu_custom_call.1} parent=5 // pred_fallthru
        _
      %p227 = scmp.lt.s32.totalorder %s16, 2
      // Predicated region
      $region37: #{tpu_custom_call.1} parent=5 // pred_check
        %p228 = pneg %p227
      $region38: #{tpu_custom_call.1} parent=5 // pred_check_branch
        %230 = sbr.rel (%p228) target = $region40
      $region39: #{tpu_custom_call.1} parent=5 // pred_region
        // Predicated region
        $region41: #{tpu_custom_call.1} parent=39 // pred_check
          %p231 = pneg %p36
        $region42: #{tpu_custom_call.1} parent=39 // pred_check_branch
          %233 = sbr.rel (%p231) target = $region44
        $region43: #{tpu_custom_call.1} parent=39 // pred_region
          %p234 = scmp.lt.s32.totalorder %s16, 1
          %s235 = scalar_select %p234, %s16, 1
          %s236 = smul.addr %s235, 2
          %s237 = smul.addr %s236, 8
          %s238 = scalar_lea.vmem %s0, %s237
        $region44: #{tpu_custom_call.1} parent=39 // pred_fallthru
          _
      $region40: #{tpu_custom_call.1} parent=5 // pred_fallthru
        _
      %p239 = scmp.le.s32.totalorder 1, %s16
      %p240 = scmp.lt.s32.totalorder %s16, 3
      %p241 = pnand %p239, %p240
      %p242 = pneg %p241
      // Predicated region
      $region45: #{tpu_custom_call.1} parent=5 // pred_check
        _
      $region46: #{tpu_custom_call.1} parent=5 // pred_check_branch
        %244 = sbr.rel (%p241) target = $region48
      $region47: #{tpu_custom_call.1} parent=5 // pred_region
        %s245 = ssub.s32 %s16, 1
        %p246 = scmp.lt.s32.totalorder %s21, 1
        %s247 = scalar_select %p246, %s21, 1
        %s248 = smul.addr %s247, 2
        %s249 = smul.addr %s248, 8
        %s250 = scalar_lea.vmem %s0, %s249
        %p251 = pneg %p42
        %p252 = pneg %p39
        %p253 = pneg %p63
        %p254 = pneg %p60
        %p255 = pneg %p84
        %p256 = pneg %p81
        %p257 = pneg %p105
        %p258 = pneg %p102
        %p259 = pneg %p126
        %p260 = pneg %p123
        %p261 = pneg %p147
        %p262 = pneg %p144
        %p263 = pneg %p168
        %p264 = pneg %p165
        %p265 = pneg %p194
        %p266 = pneg %p191
        %s267 = sand.u32 %s181, 1
        %s268 = scalar_lea.sflag [#allocation3], %s267
        %s269 = sand.u32 %s181, 1
        %s270 = smul.addr %s269, 16
        %s271 = scalar_lea.vmem [#allocation2], %s270
        %p272 = scmp.lt.s32.totalorder %s21, 1
        %s273 = scalar_select %p272, %s21, 1
        %s274 = smul.addr %s273, 2
        %s275 = smul.addr %s274, 8
        %s276 = scalar_lea.vmem %s0, %s275
        %v277 = vld [vmem:[%s276] sm:$0xff]
        %v278 = vld [vmem:[%s276 + $0x8] sm:$0xff]
        %v279 = vld [vmem:[%s1] sm:$0xff]
        %v280 = vld [vmem:[%s1 + $0x8] sm:$0xff]
        %vm281 = vcmask 64512
        %v283 = vsel %vm281, %v279, 0
        %v286 = vsel %vm281, %v280, 0
        %288 = vmatprep.subr.mxu0 %v278
        %289 = vmatpush1.msra.mxu0 %v277
        %290 = vmatprep.subr.mxu0 0.0
        %291 = vmatpush1.msra.mxu0 0.0
        %292 = vmatprep.subr.mxu0 0.0
        %293 = vmatpush1.msra.mxu0 0.0
        %294 = vmatprep.subr.mxu0 0.0
        %295 = vmatpush1.msra.mxu0 0.0
        %296 = vmatprep.subr.mxu0 0.0
        %297 = vmatpush1.msra.mxu0 0.0
        %298 = vmatprep.subr.mxu0 0.0
        %299 = vmatpush1.msra.mxu0 0.0
        %300 = vmatprep.subr.mxu0 0.0
        %301 = vmatpush1.msra.mxu0 0.0
        %302 = vmatprep.subr.mxu0 0.0
        %303 = vmatpush1.msra.mxu0 0.0
        %304 = vmatprep.subr.mxu0 0.0
        %305 = vmatpush1.msra.mxu0 0.0
        %306 = vmatprep.subr.mxu0 0.0
        %307 = vmatpush1.msra.mxu0 0.0
        %308 = vmatprep.subr.mxu0 0.0
        %309 = vmatpush1.msra.mxu0 0.0
        %310 = vmatprep.subr.mxu0 0.0
        %311 = vmatpush1.msra.mxu0 0.0
        %312 = vmatprep.subr.mxu0 0.0
        %313 = vmatpush1.msra.mxu0 0.0
        %314 = vmatprep.subr.mxu0 0.0
        %315 = vmatpush1.msra.mxu0 0.0
        %316 = vmatprep.subr.mxu0 0.0
        %317 = vmatpush1.msra.mxu0 0.0
        %318 = vmatprep.subr.mxu0 0.0
        %319 = vmatpush1.msra.mxu0 0.0
        %320 = vmatprep.subr.mxu0 0.0
        %321 = vmatpush1.msra.mxu0 0.0
        %322 = vmatprep.subr.mxu0 0.0
        %323 = vmatpush1.msra.mxu0 0.0
        %324 = vmatprep.subr.mxu0 0.0
        %325 = vmatpush1.msra.mxu0 0.0
        %326 = vmatprep.subr.mxu0 0.0
        %327 = vmatpush1.msra.mxu0 0.0
        %328 = vmatprep.subr.mxu0 0.0
        %329 = vmatpush1.msra.mxu0 0.0
        %330 = vmatprep.subr.mxu0 0.0
        %331 = vmatpush1.msra.mxu0 0.0
        %332 = vmatprep.subr.mxu0 0.0
        %333 = vmatpush1.msra.mxu0 0.0
        %334 = vmatprep.subr.mxu0 0.0
        %335 = vmatpush1.msra.mxu0 0.0
        %336 = vmatprep.subr.mxu0 0.0
        %337 = vmatpush1.msra.mxu0 0.0
        %338 = vmatprep.subr.mxu0 0.0
        %339 = vmatpush1.msra.mxu0 0.0
        %340 = vmatprep.subr.mxu0 0.0
        %341 = vmatpush1.msra.mxu0 0.0
        %342 = vmatprep.subr.mxu0 0.0
        %343 = vmatpush1.msra.mxu0 0.0
        %344 = vmatprep.subr.mxu0 0.0
        %345 = vmatpush1.msra.mxu0 0.0
        %346 = vmatprep.subr.mxu0 0.0
        %347 = vmatpush1.msra.mxu0 0.0
        %348 = vmatprep.subr.mxu0 0.0
        %349 = vmatpush1.msra.mxu0 0.0
        %350 = vmatprep.subr.mxu0 0.0
        %351 = vmatpush1.msra.mxu0 0.0
        %352 = vmatprep.mubr.f32.mxu0 0.0
        %353 = vmatmul.mubr.f32.gmra.mrb[0].mxu0 %v283
        %v354 = vpop.f32.mrb[0].mxu0
        %v355 = vadd.f32 0.0, %v354
        %v356 = vpop.f32.mrb[0].mxu0
        %v357 = vadd.f32 0.0, %v356
        %358 = vmatprep.mubr.f32.mxu0 0.0
        %359 = vmatmul.mubr.f32.gmra.mrb[0].mxu0 %v286
        %v360 = vpop.f32.mrb[0].mxu0
        %v361 = vadd.f32 0.0, %v360
        %v362 = vpop.f32.mrb[0].mxu0
        %v363 = vadd.f32 0.0, %v362
        %364 = vdwg.mxu0
        %v365 = vld [vmem:[%s2] sm:$0xff]
        %367 = vset.pattern.permute.xlu0 0
        %368 = vperm.xlu0 %367, %v365
        %v369 = vpop.permute.xlu0 %368
        %v371 = vadd.f32 %v355, %v369
        %v372 = vadd.f32 %v357, %v369
        %v373 = vmax.f32 %v371, 0.0
        %v374 = vmax.f32 %v372, 0.0
        %v375 = vadd.f32 %v361, %v363
        %376 = vadd.xlane.f32.xlu0 %v375
        %v377 = vpop.xlane.xlu0 %376
        %v378 = vmul.f32 %v377, 0.00390625
        %v379 = vld [vmem:[%s3] sm:$0xff]
        %v380 = vadd.f32 %v378, %v379
        %v381 = vmax.f32 %v380, 0.0
        %v382 = vld [vmem:[%s4] sm:$0xff]
        %v383 = vld [vmem:[%s5] sm:$0xff]
        %v385 = vsel %vm281, %v382, 0
        %387 = vmatprep.subr.mxu0 0.0
        %388 = vmatpush1.msra.mxu0 %v381
        %389 = vmatprep.subr.mxu0 0.0
        %390 = vmatpush1.msra.mxu0 0.0
        %391 = vmatprep.subr.mxu0 0.0
        %392 = vmatpush1.msra.mxu0 0.0
        %393 = vmatprep.subr.mxu0 0.0
        %394 = vmatpush1.msra.mxu0 0.0
        %395 = vmatprep.subr.mxu0 0.0
        %396 = vmatpush1.msra.mxu0 0.0
        %397 = vmatprep.subr.mxu0 0.0
        %398 = vmatpush1.msra.mxu0 0.0
        %399 = vmatprep.subr.mxu0 0.0
        %400 = vmatpush1.msra.mxu0 0.0
        %401 = vmatprep.subr.mxu0 0.0
        %402 = vmatpush1.msra.mxu0 0.0
        %403 = vmatprep.subr.mxu0 0.0
        %404 = vmatpush1.msra.mxu0 0.0
        %405 = vmatprep.subr.mxu0 0.0
        %406 = vmatpush1.msra.mxu0 0.0
        %407 = vmatprep.subr.mxu0 0.0
        %408 = vmatpush1.msra.mxu0 0.0
        %409 = vmatprep.subr.mxu0 0.0
        %410 = vmatpush1.msra.mxu0 0.0
        %411 = vmatprep.subr.mxu0 0.0
        %412 = vmatpush1.msra.mxu0 0.0
        %413 = vmatprep.subr.mxu0 0.0
        %414 = vmatpush1.msra.mxu0 0.0
        %415 = vmatprep.subr.mxu0 0.0
        %416 = vmatpush1.msra.mxu0 0.0
        %417 = vmatprep.subr.mxu0 0.0
        %418 = vmatpush1.msra.mxu0 0.0
        %419 = vmatprep.subr.mxu0 0.0
        %420 = vmatpush1.msra.mxu0 0.0
        %421 = vmatprep.subr.mxu0 0.0
        %422 = vmatpush1.msra.mxu0 0.0
        %423 = vmatprep.subr.mxu0 0.0
        %424 = vmatpush1.msra.mxu0 0.0
        %425 = vmatprep.subr.mxu0 0.0
        %426 = vmatpush1.msra.mxu0 0.0
        %427 = vmatprep.subr.mxu0 0.0
        %428 = vmatpush1.msra.mxu0 0.0
        %429 = vmatprep.subr.mxu0 0.0
        %430 = vmatpush1.msra.mxu0 0.0
        %431 = vmatprep.subr.mxu0 0.0
        %432 = vmatpush1.msra.mxu0 0.0
        %433 = vmatprep.subr.mxu0 0.0
        %434 = vmatpush1.msra.mxu0 0.0
        %435 = vmatprep.subr.mxu0 0.0
        %436 = vmatpush1.msra.mxu0 0.0
        %437 = vmatprep.subr.mxu0 0.0
        %438 = vmatpush1.msra.mxu0 0.0
        %439 = vmatprep.subr.mxu0 0.0
        %440 = vmatpush1.msra.mxu0 0.0
        %441 = vmatprep.subr.mxu0 0.0
        %442 = vmatpush1.msra.mxu0 0.0
        %443 = vmatprep.subr.mxu0 0.0
        %444 = vmatpush1.msra.mxu0 0.0
        %445 = vmatprep.subr.mxu0 0.0
        %446 = vmatpush1.msra.mxu0 0.0
        %447 = vmatprep.subr.mxu0 0.0
        %448 = vmatpush1.msra.mxu0 0.0
        %449 = vmatprep.subr.mxu0 0.0
        %450 = vmatpush1.msra.mxu0 0.0
        %451 = vmatprep.mubr.f32.mxu0 0.0
        %452 = vmatmul.mubr.f32.gmra.mrb[0].mxu0 %v385
        %v453 = vpop.f32.mrb[0].mxu0
        %v454 = vadd.f32 %v383, %v453
        %v455 = vpop.f32.mrb[0].mxu0
        %456 = vdwg.mxu0
        %v457 = vld [vmem:[%s6] sm:$0xff]
        %v458 = vld [vmem:[%s6 + $0x8] sm:$0xff]
        %v459 = vld [vmem:[%s6 + $0x10] sm:$0xff]
        %v461 = vsel %vm281, %v457, 0
        %v464 = vsel %vm281, %v458, 0
        %v467 = vsel %vm281, %v459, 0
        %469 = vmatprep.subr.mxu0 %v374
        %470 = vmatpush1.msra.mxu0 %v373
        %471 = vmatprep.subr.mxu0 0.0
        %472 = vmatpush1.msra.mxu0 0.0
        %473 = vmatprep.subr.mxu0 0.0
        %474 = vmatpush1.msra.mxu0 0.0
        %475 = vmatprep.subr.mxu0 0.0
        %476 = vmatpush1.msra.mxu0 0.0
        %477 = vmatprep.subr.mxu0 0.0
        %478 = vmatpush1.msra.mxu0 0.0
        %479 = vmatprep.subr.mxu0 0.0
        %480 = vmatpush1.msra.mxu0 0.0
        %481 = vmatprep.subr.mxu0 0.0
        %482 = vmatpush1.msra.mxu0 0.0
        %483 = vmatprep.subr.mxu0 0.0
        %484 = vmatpush1.msra.mxu0 0.0
        %485 = vmatprep.subr.mxu0 0.0
        %486 = vmatpush1.msra.mxu0 0.0
        %487 = vmatprep.subr.mxu0 0.0
        %488 = vmatpush1.msra.mxu0 0.0
        %489 = vmatprep.subr.mxu0 0.0
        %490 = vmatpush1.msra.mxu0 0.0
        %491 = vmatprep.subr.mxu0 0.0
        %492 = vmatpush1.msra.mxu0 0.0
        %493 = vmatprep.subr.mxu0 0.0
        %494 = vmatpush1.msra.mxu0 0.0
        %495 = vmatprep.subr.mxu0 0.0
        %496 = vmatpush1.msra.mxu0 0.0
        %497 = vmatprep.subr.mxu0 0.0
        %498 = vmatpush1.msra.mxu0 0.0
        %499 = vmatprep.subr.mxu0 0.0
        %500 = vmatpush1.msra.mxu0 0.0
        %501 = vmatprep.subr.mxu0 0.0
        %502 = vmatpush1.msra.mxu0 0.0
        %503 = vmatprep.subr.mxu0 0.0
        %504 = vmatpush1.msra.mxu0 0.0
        %505 = vmatprep.subr.mxu0 0.0
        %506 = vmatpush1.msra.mxu0 0.0
        %507 = vmatprep.subr.mxu0 0.0
        %508 = vmatpush1.msra.mxu0 0.0
        %509 = vmatprep.subr.mxu0 0.0
        %510 = vmatpush1.msra.mxu0 0.0
        %511 = vmatprep.subr.mxu0 0.0
        %512 = vmatpush1.msra.mxu0 0.0
        %513 = vmatprep.subr.mxu0 0.0
        %514 = vmatpush1.msra.mxu0 0.0
        %515 = vmatprep.subr.mxu0 0.0
        %516 = vmatpush1.msra.mxu0 0.0
        %517 = vmatprep.subr.mxu0 0.0
        %518 = vmatpush1.msra.mxu0 0.0
        %519 = vmatprep.subr.mxu0 0.0
        %520 = vmatpush1.msra.mxu0 0.0
        %521 = vmatprep.subr.mxu0 0.0
        %522 = vmatpush1.msra.mxu0 0.0
        %523 = vmatprep.subr.mxu0 0.0
        %524 = vmatpush1.msra.mxu0 0.0
        %525 = vmatprep.subr.mxu0 0.0
        %526 = vmatpush1.msra.mxu0 0.0
        %527 = vmatprep.subr.mxu0 0.0
        %528 = vmatpush1.msra.mxu0 0.0
        %529 = vmatprep.subr.mxu0 0.0
        %530 = vmatpush1.msra.mxu0 0.0
        %531 = vmatprep.subr.mxu0 0.0
        %532 = vmatpush1.msra.mxu0 0.0
        %533 = vmatprep.mubr.f32.mxu0 0.0
        %534 = vmatmul.mubr.f32.gmra.mrb[0].mxu0 %v461
        %v535 = vpop.f32.mrb[0].mxu0
        %v536 = vadd.f32 0.0, %v535
        %v537 = vpop.f32.mrb[0].mxu0
        %v538 = vadd.f32 0.0, %v537
        %539 = vmatprep.mubr.f32.mxu0 0.0
        %540 = vmatmul.mubr.f32.gmra.mrb[0].mxu0 %v464
        %v541 = vpop.f32.mrb[0].mxu0
        %v542 = vadd.f32 0.0, %v541
        %v543 = vpop.f32.mrb[0].mxu0
        %v544 = vadd.f32 0.0, %v543
        %545 = vmatprep.mubr.f32.mxu0 0.0
        %546 = vmatmul.mubr.f32.gmra.mrb[0].mxu0 %v467
        %v547 = vpop.f32.mrb[0].mxu0
        %v548 = vadd.f32 0.0, %v547
        %v549 = vpop.f32.mrb[0].mxu0
        %v550 = vadd.f32 0.0, %v549
        %551 = vdwg.mxu0
        %v552 = vlaneseq
        %v553 = vand.u32 %v552, 127
        %v554 = vadd.s32 %v553, 128
        %vm555 = vcmp.lt.s32.totalorder %v553, 0
        %v556 = vsub.s32 0, %v553
        %v557 = vsel %vm555, %v556, %v553
        %v558 = vshrl.u32 %v557, 4
        %v559 = vand.u32 %v557, 15
        %v560 = vsub.s32 0, %v559
        %v561 = vsel %vm555, %v560, %v559
        %vm562 = vcmp.lt.s32.totalorder %v554, 0
        %v563 = vsub.s32 0, %v554
        %v564 = vsel %vm562, %v563, %v554
        %v565 = vshrl.u32 %v564, 4
        %v566 = vand.u32 %v564, 15
        %v567 = vsub.s32 0, %v566
        %v568 = vsel %vm562, %v567, %v566
        %vm569 = vcmp.ne.s32.totalorder %v561, 0
        %vm570 = vcmp.ne.s32.totalorder %v568, 0
        %vm571 = vcmp.lt.s32.totalorder %v561, 0
        %vm572 = vcmp.lt.s32.totalorder %v568, 0
        %vm573 = vmand %vm571, %vm569
        %vm574 = vmand %vm572, %vm570
        %v575 = vadd.s32 %v561, 16
        %v576 = vadd.s32 %v568, 16
        %v577 = vsel %vm573, %v575, %v561
        %v578 = vsel %vm574, %v576, %v568
        %vm579 = vcmp.ge.s32.totalorder %v553, 64
        %vm580 = vcmp.ge.s32.totalorder %v554, 64
        %v581 = vsel %vm579, 1, 0
        %v582 = vsel %vm580, 1, 0
        %v583 = vcvt.s32.f32 %v581
        %v584 = vcvt.s32.f32 %v582
        %vm585 = vcmp.lt.s32.totalorder %v553, 192
        %vm586 = vcmp.lt.s32.totalorder %v554, 192
        %v587 = vsel %vm585, 1, 0
        %v588 = vsel %vm586, 1, 0
        %v589 = vcvt.s32.f32 %v587
        %v590 = vcvt.s32.f32 %v588
        %vm591 = vcmp.ge.s32.totalorder %v577, 4
        %vm592 = vcmp.ge.s32.totalorder %v578, 4
        %v593 = vsel %vm591, 1, 0
        %v594 = vsel %vm592, 1, 0
        %v595 = vcvt.s32.f32 %v593
        %v596 = vcvt.s32.f32 %v594
        %vm597 = vcmp.lt.s32.totalorder %v577, 12
        %vm598 = vcmp.lt.s32.totalorder %v578, 12
        %v599 = vsel %vm597, 1, 0
        %v600 = vsel %vm598, 1, 0
        %v601 = vcvt.s32.f32 %v599
        %v602 = vcvt.s32.f32 %v600
        %603 = vrot.lane.b32.xlu0 %v536, 64
        %v604 = vpop.permute.xlu0 %603
        %605 = vrot.lane.b32.xlu0 %v538, 64
        %v606 = vpop.permute.xlu0 %605
        %vm607 = vcmp.lt.s32.totalorder %v553, 64
        %v608 = vsel %vm607, %v604, %v606
        %v609 = vsel %vm607, %v606, %v604
        %v610 = vmul.f32 %v609, %v583
        %v611 = vmul.f32 %v608, %v584
        %v612 = vadd.f32 %v610, %v542
        %v613 = vadd.f32 %v611, %v544
        %614 = vrot.lane.b32.xlu0 %v548, 64
        %v615 = vpop.permute.xlu0 %614
        %616 = vrot.lane.b32.xlu0 %v550, 64
        %v617 = vpop.permute.xlu0 %616
        %v618 = vsel %vm607, %v615, %v617
        %v619 = vsel %vm607, %v617, %v615
        %v620 = vmul.f32 %v618, %v589
        %v621 = vmul.f32 %v619, %v590
        %v622 = vadd.f32 %v612, %v620
        %v623 = vadd.f32 %v613, %v621
        %624 = vrot.lane.b32.xlu0 %v622, 4
        %v625 = vpop.permute.xlu0 %624
        %626 = vrot.lane.b32.xlu0 %v623, 4
        %v627 = vpop.permute.xlu0 %626
        %vm628 = vcmp.lt.s32.totalorder %v553, 4
        %v629 = vsel %vm628, %v625, %v627
        %v630 = vsel %vm628, %v627, %v625
        %v631 = vmul.f32 %v630, %v595
        %v632 = vmul.f32 %v629, %v596
        %v635 = vrot.slane %v631, 7
        %v636 = vrot.slane %v632, 7
        %v639 = vadd.f32 %v622, %v635
        %v640 = vadd.f32 %v623, %v636
        %v643 = vrot.slane %v622, 2
        %v644 = vrot.slane %v623, 2
        %647 = vrot.lane.b32.xlu0 %v643, 124
        %v648 = vpop.permute.xlu0 %647
        %649 = vrot.lane.b32.xlu0 %v644, 124
        %v650 = vpop.permute.xlu0 %649
        %vm651 = vcmp.lt.s32.totalorder %v553, 124
        %v652 = vsel %vm651, %v648, %v650
        %v653 = vsel %vm651, %v650, %v648
        %v654 = vmul.f32 %v652, %v601
        %v655 = vmul.f32 %v653, %v602
        %v658 = vrot.slane %v654, 7
        %v659 = vrot.slane %v655, 7
        %v662 = vadd.f32 %v639, %v658
        %v663 = vadd.f32 %v640, %v659
        %665 = vset.pattern.permute.xlu0 0
        %666 = vperm.xlu0 %665, %v454
        %v667 = vpop.permute.xlu0 %666
        %v669 = vlaneseq
        %v670 = vshrl.u32 %v669, 7
        %v671 = vsub.s32 1, %v670
        %v672 = vrot.slane %v662, %v671
        %v673 = vlaneseq
        %v674 = vshrl.u32 %v673, 7
        %v675 = vsub.s32 1, %v674
        %v676 = vrot.slane %v663, %v675
        %v677 = vadd.f32 %v667, %v672
        %v678 = vadd.f32 %v667, %v676
        %v679 = vxor.u32 %v677, 2147483648
        %v680 = vxor.u32 %v678, 2147483648
        %v681 = vmul.f32 %v679, 1.442695
        %v682 = vpow.pop %v681
        %v683 = vmul.f32 %v680, 1.442695
        %v684 = vpow.pop %v683
        %v685 = vadd.f32 %v682, 1.0
        %v686 = vadd.f32 %v684, 1.0
        %v687 = vrcp.pop %v685
        %v688 = vmul.f32 1.0, %v687
        %v689 = vrcp.pop %v686
        %v690 = vmul.f32 1.0, %v689
        %691 = vst [vmem:[%s271] sm:$0xff] %v688
        %692 = vst [vmem:[%s271 + $0x8] sm:$0xff] %v690
        %s693 = sand.u32 %s181, 1
        %s694 = scalar_lea.sflag [#allocation3], %s693
        %s695 = sand.u32 %s181, 1
        %s696 = smul.addr %s695, 16
        %s697 = scalar_lea.vmem [#allocation2], %s696
        // Predicated region
        $region49: #{tpu_custom_call.1} parent=47 // pred_check
          %p698 = pneg %p191
        $region50: #{tpu_custom_call.1} parent=47 // pred_check_branch
          %700 = sbr.rel (%p698) target = $region52
        $region51: #{tpu_custom_call.1} parent=47 // pred_region
          %s702 = ssub.s32 256, 256
          %703 = vsyncadd %s694, %s702
          %s704 = smul.addr %s21, 2
          %s705 = smul.addr %s704, 128
          %s706 = scalar_lea.hbm %s7, %s705
          %s708 = sshll.u32 %s697, 4
          %s709 = int_to_ptr.vmem [resolvable:$true] %s708
          %711 = dma.vmem_to_hbm [thread:$0]  %s709, 256, %s706, %s694
        $region52: #{tpu_custom_call.1} parent=47 // pred_fallthru
          _
      $region48: #{tpu_custom_call.1} parent=5 // pred_fallthru
        _
      %p712 = scmp.le.s32.totalorder 2, %s16
      // Predicated region
      $region53: #{tpu_custom_call.1} parent=5 // pred_check
        %p713 = pneg %p712
      $region54: #{tpu_custom_call.1} parent=5 // pred_check_branch
        %715 = sbr.rel (%p713) target = $region56
      $region55: #{tpu_custom_call.1} parent=5 // pred_region
        %s716 = ssub.s32 %s16, 2
        // Predicated region
        $region57: #{tpu_custom_call.1} parent=55 // pred_check
          %p717 = pneg %p197
        $region58: #{tpu_custom_call.1} parent=55 // pred_check_branch
          %719 = sbr.rel (%p717) target = $region60
        $region59: #{tpu_custom_call.1} parent=55 // pred_region
          %s720 = sand.u32 %s182, 1
          %s721 = scalar_lea.sflag [#allocation3], %s720
          %s722 = sand.u32 %s182, 1
          %s723 = smul.addr %s722, 16
          %s724 = scalar_lea.vmem [#allocation2], %s723
          %725 = dma.done %s721, 256
        $region60: #{tpu_custom_call.1} parent=55 // pred_fallthru
          _
      $region56: #{tpu_custom_call.1} parent=5 // pred_fallthru
        _
    $region6: #{tpu_custom_call.1} parent=1 // loop_footer
      %s20 = sadd.s32 1, %s16
    $region7: #{tpu_custom_call.1} parent=1 // loop_footer_branch
      %15 = sbr.rel target = $region3
    $region8: #{tpu_custom_call.1} parent=1 // loop_exit
      _
    %726 = vsyncpa [#allocation3], 1
    %s727 = scalar_lea.sflag [#allocation3], 1
    %728 = vsyncpa %s727, 1

</llo_original>
